<compile_context>
chip_gen: v6e
topology: v6e:2x2x1
jax: 0.10.0
libtpu: 0.0.40
codegen_flags: <defaults>
</compile_context>

<pallas_src>
import jax
import jax.numpy as jnp
from jax.experimental import pallas as pl
from jax.experimental.pallas import tpu as pltpu


def _mlp_kernel(x_ref, w1_ref, b1_ref, nw2_ref, nb2_ref, o_ref):
    # x_ref  : (5, TS, L) f32 VMEM  -- batch tile on (sublane, lane)
    # w1_ref : (5, 10)    f32 SMEM  -- fc1 weight, [in, out]
    # b1_ref : (10,)      f32 SMEM  -- fc1 bias
    # nw2_ref: (10,)      f32 SMEM  -- negated fc2 weight
    # nb2_ref: (1,)       f32 SMEM  -- negated fc2 bias
    # o_ref  : (TS, L)    f32 VMEM  -- sigmoid output (lane-dense)
    n_in, n_hid = w1_ref.shape                       # 5, 10 (static)
    xs = [x_ref[i] for i in range(n_in)]             # each (TS, L), dense vregs

    # Accumulate nz = -(relu(x @ w1 + b1) @ w2 + b2) = -logit directly
    # (negation folded into the weights by the wrapper -> no vector negate).
    nz = jnp.full(o_ref.shape, nb2_ref[0], dtype=jnp.float32)

    # Layer 1 + ReLU + layer 2 as broadcast FMAs on the VPU (static unroll).
    for j in range(n_hid):
        h = jnp.full(o_ref.shape, b1_ref[j], dtype=jnp.float32)
        for i in range(n_in):
            h = h + w1_ref[i, j] * xs[i]
        h = jnp.maximum(h, 0.0)                      # ReLU
        nz = nz + nw2_ref[j] * h

    # Sigmoid: exp on the EUP + exact f32 divide (approx reciprocal was the
    # source of the previous numeric failure).
    o_ref[...] = 1.0 / (1.0 + jnp.exp(nz))


# Candidate tiles: sublane rows (multiple of 8) x lanes (multiple of 128).
_TILE_CANDIDATES = [(s, l) for s in (8, 16, 32, 64) for l in (128, 256, 512, 1024)]
_PER_STEP_NS = 350.0   # measured per-grid-step pipeline overhead
_PER_ROW_NS = 0.1      # ~wrapper+kernel HBM + VALU cost per (padded) batch row


def _choose_tiles(batch):
    """Pick (sub_tile, lane_tile) minimizing steps*overhead + padded_rows*row_cost.

    Large B -> (64, 1024) tiles (per-step VMEM ~3 MiB double-buffered, safe on
    every chip); small/mid B -> smaller tiles so padding waste stays cheap.
    Ties prefer larger lane_tile (lane-dense stores) then larger sub_tile.
    """
    def cost(sl):
        s, l = sl
        tile = s * l
        steps = -(-batch // tile)
        return (steps * _PER_STEP_NS + steps * tile * _PER_ROW_NS, -l, -s)
    return min(_TILE_CANDIDATES, key=cost)


def central_classifier(x, w1, b1, w2, b2, *, sub_tile=None, lane_tile=None):
    """x: (B, 5) f32 -> (B, 1) f32 = sigmoid(relu(x @ w1 + b1) @ w2 + b2).

    Weights are [in, out] (transposed from PyTorch nn.Linear).  Call under
    jax.jit so the pad/transpose layout plumbing fuses into a single HBM pass.
    """
    B, f_in = x.shape
    if sub_tile is None or lane_tile is None:
        sub_tile, lane_tile = _choose_tiles(B)
    assert sub_tile % 8 == 0 and lane_tile % 128 == 0
    tile = sub_tile * lane_tile

    # Single fused pad; padded zero rows are computed then sliced off.
    pad = (-B) % tile
    b_pad = B + pad
    rows = b_pad // lane_tile                        # multiple of sub_tile
    x_lanes = jnp.pad(x.astype(jnp.float32), ((0, pad), (0, 0)))
    x_lanes = x_lanes.T.reshape(f_in, rows, lane_tile)   # (5, rows, L)

    grid = (rows // sub_tile,)

    out = pl.pallas_call(
        _mlp_kernel,
        out_shape=jax.ShapeDtypeStruct((rows, lane_tile), jnp.float32),
        grid_spec=pltpu.PrefetchScalarGridSpec(
            num_scalar_prefetch=0,
            grid=grid,
            in_specs=[
                # Streamed batch tiles: (5, TS, L); leading dim is the full 5.
                pl.BlockSpec((f_in, sub_tile, lane_tile), lambda i: (0, i, 0)),
                # Tiny weights/biases: whole arrays resident in SMEM.
                pl.BlockSpec(memory_space=pltpu.MemorySpace.SMEM),  # w1  (5,10)
                pl.BlockSpec(memory_space=pltpu.MemorySpace.SMEM),  # b1  (10,)
                pl.BlockSpec(memory_space=pltpu.MemorySpace.SMEM),  # -w2 (10,)
                pl.BlockSpec(memory_space=pltpu.MemorySpace.SMEM),  # -b2 (1,)
            ],
            out_specs=pl.BlockSpec((sub_tile, lane_tile), lambda i: (i, 0)),
        ),
        compiler_params=pltpu.CompilerParams(
            # Batch tiles are independent -> shard across TCs on v7x.
            dimension_semantics=("parallel",),
        ),
    )(
        x_lanes,
        w1.astype(jnp.float32),
        b1.reshape(-1).astype(jnp.float32),
        (-w2).reshape(-1).astype(jnp.float32),
        (-b2).reshape(-1).astype(jnp.float32),
    )

    # (rows, L) row-major flatten == original batch order.
    return out.reshape(b_pad, 1)[:B]


def _reference(x, w1, b1, w2, b2):
    h = jnp.maximum(x @ w1 + b1, 0.0)
    return jax.nn.sigmoid(h @ w2 + b2)


if __name__ == "__main__":
    key = jax.random.PRNGKey(0)
    k_x, k_w1, k_b1, k_w2, k_b2 = jax.random.split(key, 5)

    IN, HID, OUT = 5, 10, 1
    B = 2500   # small; not a tile multiple -> exercises padding + final slice

    x = jax.random.normal(k_x, (B, IN), dtype=jnp.float32)

    # PyTorch-style init (uniform bound 1/sqrt(fan_in)), stored as [in, out].
    bound1 = 1.0 / jnp.sqrt(IN)
    w1 = jax.random.uniform(k_w1, (IN, HID), jnp.float32, -bound1, bound1)
    b1 = jax.random.uniform(k_b1, (HID,), jnp.float32, -bound1, bound1)
    bound2 = 1.0 / jnp.sqrt(HID)
    w2 = jax.random.uniform(k_w2, (HID, OUT), jnp.float32, -bound2, bound2)
    b2 = jax.random.uniform(k_b2, (OUT,), jnp.float32, -bound2, bound2)

    fwd = jax.jit(central_classifier, static_argnames=("sub_tile", "lane_tile"))
    y_ref = _reference(x, w1, b1, w2, b2)

    # 1) Adaptive tile selection (single large grid step for this B).
    y = fwd(x, w1, b1, w2, b2)
    jax.block_until_ready(y)
    assert y.shape == (B, OUT)
    assert jnp.allclose(y, y_ref, atol=1e-4, rtol=1e-4)

    # 2) Forced small tile -> multi-step grid; exercises the index maps.
    y2 = fwd(x, w1, b1, w2, b2, sub_tile=8, lane_tile=128)
    jax.block_until_ready(y2)
    assert jnp.allclose(y2, y_ref, atol=1e-4, rtol=1e-4)

    print("KERNEL_OK")
</pallas_src>

<mosaic_0001>
module attributes {stable_mosaic.version = 11 : i64} {
  func.func @_mlp_kernel(%arg0: i32, %arg1: memref<5x8x512xf32, #tpu.memory_space<vmem>>, %arg2: memref<5x10xf32, #tpu.memory_space<smem>>, %arg3: memref<10xf32, #tpu.memory_space<smem>>, %arg4: memref<10xf32, #tpu.memory_space<smem>>, %arg5: memref<1xf32, #tpu.memory_space<smem>>, %arg6: memref<8x512xf32, #tpu.memory_space<vmem>>) attributes {dimension_semantics = [#tpu.dimension_semantics<parallel>], iteration_bounds = array<i64: 1>, scalar_prefetch = 0 : i64, scratch_operands = 0 : i64, tpu.core_type = #tpu.core_type<tc>, window_params = [{transform_indices = @transform_0, window_bounds = array<i64: 5, 8, 512>}, {transform_indices = @transform_1, window_bounds = array<i64: 5, 10>}, {transform_indices = @transform_2, window_bounds = array<i64: 10>}, {transform_indices = @transform_3, window_bounds = array<i64: 10>}, {transform_indices = @transform_4, window_bounds = array<i64: 1>}, {transform_indices = @transform_5, window_bounds = array<i64: 8, 512>}]} {
    %c0 = arith.constant 0 : index
    %c0_0 = arith.constant 0 : index
    %c0_1 = arith.constant 0 : index
    %0 = vector.load %arg1[%c0, %c0_0, %c0_1] : memref<5x8x512xf32, #tpu.memory_space<vmem>>, vector<1x8x512xf32>
    %1 = vector.shape_cast %0 : vector<1x8x512xf32> to vector<8x512xf32>
    %c1 = arith.constant 1 : index
    %c0_2 = arith.constant 0 : index
    %c0_3 = arith.constant 0 : index
    %2 = vector.load %arg1[%c1, %c0_2, %c0_3] : memref<5x8x512xf32, #tpu.memory_space<vmem>>, vector<1x8x512xf32>
    %3 = vector.shape_cast %2 : vector<1x8x512xf32> to vector<8x512xf32>
    %c2 = arith.constant 2 : index
    %c0_4 = arith.constant 0 : index
    %c0_5 = arith.constant 0 : index
    %4 = vector.load %arg1[%c2, %c0_4, %c0_5] : memref<5x8x512xf32, #tpu.memory_space<vmem>>, vector<1x8x512xf32>
    %5 = vector.shape_cast %4 : vector<1x8x512xf32> to vector<8x512xf32>
    %c3 = arith.constant 3 : index
    %c0_6 = arith.constant 0 : index
    %c0_7 = arith.constant 0 : index
    %6 = vector.load %arg1[%c3, %c0_6, %c0_7] : memref<5x8x512xf32, #tpu.memory_space<vmem>>, vector<1x8x512xf32>
    %7 = vector.shape_cast %6 : vector<1x8x512xf32> to vector<8x512xf32>
    %c4 = arith.constant 4 : index
    %c0_8 = arith.constant 0 : index
    %c0_9 = arith.constant 0 : index
    %8 = vector.load %arg1[%c4, %c0_8, %c0_9] : memref<5x8x512xf32, #tpu.memory_space<vmem>>, vector<1x8x512xf32>
    %9 = vector.shape_cast %8 : vector<1x8x512xf32> to vector<8x512xf32>
    %c0_10 = arith.constant 0 : index
    %10 = memref.load %arg5[%c0_10] : memref<1xf32, #tpu.memory_space<smem>>
    %11 = vector.broadcast %10 : f32 to vector<8x512xf32>
    %c0_11 = arith.constant 0 : index
    %12 = memref.load %arg3[%c0_11] : memref<10xf32, #tpu.memory_space<smem>>
    %13 = vector.broadcast %12 : f32 to vector<8x512xf32>
    %c0_12 = arith.constant 0 : index
    %c0_13 = arith.constant 0 : index
    %14 = memref.load %arg2[%c0_12, %c0_13] : memref<5x10xf32, #tpu.memory_space<smem>>
    %15 = vector.broadcast %14 : f32 to vector<8x512xf32>
    %16 = arith.mulf %15, %1 : vector<8x512xf32>
    %17 = arith.addf %13, %16 : vector<8x512xf32>
    %c1_14 = arith.constant 1 : index
    %c0_15 = arith.constant 0 : index
    %18 = memref.load %arg2[%c1_14, %c0_15] : memref<5x10xf32, #tpu.memory_space<smem>>
    %19 = vector.broadcast %18 : f32 to vector<8x512xf32>
    %20 = arith.mulf %19, %3 : vector<8x512xf32>
    %21 = arith.addf %17, %20 : vector<8x512xf32>
    %c2_16 = arith.constant 2 : index
    %c0_17 = arith.constant 0 : index
    %22 = memref.load %arg2[%c2_16, %c0_17] : memref<5x10xf32, #tpu.memory_space<smem>>
    %23 = vector.broadcast %22 : f32 to vector<8x512xf32>
    %24 = arith.mulf %23, %5 : vector<8x512xf32>
    %25 = arith.addf %21, %24 : vector<8x512xf32>
    %c3_18 = arith.constant 3 : index
    %c0_19 = arith.constant 0 : index
    %26 = memref.load %arg2[%c3_18, %c0_19] : memref<5x10xf32, #tpu.memory_space<smem>>
    %27 = vector.broadcast %26 : f32 to vector<8x512xf32>
    %28 = arith.mulf %27, %7 : vector<8x512xf32>
    %29 = arith.addf %25, %28 : vector<8x512xf32>
    %c4_20 = arith.constant 4 : index
    %c0_21 = arith.constant 0 : index
    %30 = memref.load %arg2[%c4_20, %c0_21] : memref<5x10xf32, #tpu.memory_space<smem>>
    %31 = vector.broadcast %30 : f32 to vector<8x512xf32>
    %32 = arith.mulf %31, %9 : vector<8x512xf32>
    %33 = arith.addf %29, %32 : vector<8x512xf32>
    %cst = arith.constant 0.000000e+00 : f32
    %34 = vector.broadcast %cst : f32 to vector<8x512xf32>
    %35 = arith.maximumf %33, %34 : vector<8x512xf32>
    %c0_22 = arith.constant 0 : index
    %36 = memref.load %arg4[%c0_22] : memref<10xf32, #tpu.memory_space<smem>>
    %37 = vector.broadcast %36 : f32 to vector<8x512xf32>
    %38 = arith.mulf %37, %35 : vector<8x512xf32>
    %39 = arith.addf %11, %38 : vector<8x512xf32>
    %c1_23 = arith.constant 1 : index
    %40 = memref.load %arg3[%c1_23] : memref<10xf32, #tpu.memory_space<smem>>
    %41 = vector.broadcast %40 : f32 to vector<8x512xf32>
    %c0_24 = arith.constant 0 : index
    %c1_25 = arith.constant 1 : index
    %42 = memref.load %arg2[%c0_24, %c1_25] : memref<5x10xf32, #tpu.memory_space<smem>>
    %43 = vector.broadcast %42 : f32 to vector<8x512xf32>
    %44 = arith.mulf %43, %1 : vector<8x512xf32>
    %45 = arith.addf %41, %44 : vector<8x512xf32>
    %c1_26 = arith.constant 1 : index
    %c1_27 = arith.constant 1 : index
    %46 = memref.load %arg2[%c1_26, %c1_27] : memref<5x10xf32, #tpu.memory_space<smem>>
    %47 = vector.broadcast %46 : f32 to vector<8x512xf32>
    %48 = arith.mulf %47, %3 : vector<8x512xf32>
    %49 = arith.addf %45, %48 : vector<8x512xf32>
    %c2_28 = arith.constant 2 : index
    %c1_29 = arith.constant 1 : index
    %50 = memref.load %arg2[%c2_28, %c1_29] : memref<5x10xf32, #tpu.memory_space<smem>>
    %51 = vector.broadcast %50 : f32 to vector<8x512xf32>
    %52 = arith.mulf %51, %5 : vector<8x512xf32>
    %53 = arith.addf %49, %52 : vector<8x512xf32>
    %c3_30 = arith.constant 3 : index
    %c1_31 = arith.constant 1 : index
    %54 = memref.load %arg2[%c3_30, %c1_31] : memref<5x10xf32, #tpu.memory_space<smem>>
    %55 = vector.broadcast %54 : f32 to vector<8x512xf32>
    %56 = arith.mulf %55, %7 : vector<8x512xf32>
    %57 = arith.addf %53, %56 : vector<8x512xf32>
    %c4_32 = arith.constant 4 : index
    %c1_33 = arith.constant 1 : index
    %58 = memref.load %arg2[%c4_32, %c1_33] : memref<5x10xf32, #tpu.memory_space<smem>>
    %59 = vector.broadcast %58 : f32 to vector<8x512xf32>
    %60 = arith.mulf %59, %9 : vector<8x512xf32>
    %61 = arith.addf %57, %60 : vector<8x512xf32>
    %cst_34 = arith.constant 0.000000e+00 : f32
    %62 = vector.broadcast %cst_34 : f32 to vector<8x512xf32>
    %63 = arith.maximumf %61, %62 : vector<8x512xf32>
    %c1_35 = arith.constant 1 : index
    %64 = memref.load %arg4[%c1_35] : memref<10xf32, #tpu.memory_space<smem>>
    %65 = vector.broadcast %64 : f32 to vector<8x512xf32>
    %66 = arith.mulf %65, %63 : vector<8x512xf32>
    %67 = arith.addf %39, %66 : vector<8x512xf32>
    %c2_36 = arith.constant 2 : index
    %68 = memref.load %arg3[%c2_36] : memref<10xf32, #tpu.memory_space<smem>>
    %69 = vector.broadcast %68 : f32 to vector<8x512xf32>
    %c0_37 = arith.constant 0 : index
    %c2_38 = arith.constant 2 : index
    %70 = memref.load %arg2[%c0_37, %c2_38] : memref<5x10xf32, #tpu.memory_space<smem>>
    %71 = vector.broadcast %70 : f32 to vector<8x512xf32>
    %72 = arith.mulf %71, %1 : vector<8x512xf32>
    %73 = arith.addf %69, %72 : vector<8x512xf32>
    %c1_39 = arith.constant 1 : index
    %c2_40 = arith.constant 2 : index
    %74 = memref.load %arg2[%c1_39, %c2_40] : memref<5x10xf32, #tpu.memory_space<smem>>
    %75 = vector.broadcast %74 : f32 to vector<8x512xf32>
    %76 = arith.mulf %75, %3 : vector<8x512xf32>
    %77 = arith.addf %73, %76 : vector<8x512xf32>
    %c2_41 = arith.constant 2 : index
    %c2_42 = arith.constant 2 : index
    %78 = memref.load %arg2[%c2_41, %c2_42] : memref<5x10xf32, #tpu.memory_space<smem>>
    %79 = vector.broadcast %78 : f32 to vector<8x512xf32>
    %80 = arith.mulf %79, %5 : vector<8x512xf32>
    %81 = arith.addf %77, %80 : vector<8x512xf32>
    %c3_43 = arith.constant 3 : index
    %c2_44 = arith.constant 2 : index
    %82 = memref.load %arg2[%c3_43, %c2_44] : memref<5x10xf32, #tpu.memory_space<smem>>
    %83 = vector.broadcast %82 : f32 to vector<8x512xf32>
    %84 = arith.mulf %83, %7 : vector<8x512xf32>
    %85 = arith.addf %81, %84 : vector<8x512xf32>
    %c4_45 = arith.constant 4 : index
    %c2_46 = arith.constant 2 : index
    %86 = memref.load %arg2[%c4_45, %c2_46] : memref<5x10xf32, #tpu.memory_space<smem>>
    %87 = vector.broadcast %86 : f32 to vector<8x512xf32>
    %88 = arith.mulf %87, %9 : vector<8x512xf32>
    %89 = arith.addf %85, %88 : vector<8x512xf32>
    %cst_47 = arith.constant 0.000000e+00 : f32
    %90 = vector.broadcast %cst_47 : f32 to vector<8x512xf32>
    %91 = arith.maximumf %89, %90 : vector<8x512xf32>
    %c2_48 = arith.constant 2 : index
    %92 = memref.load %arg4[%c2_48] : memref<10xf32, #tpu.memory_space<smem>>
    %93 = vector.broadcast %92 : f32 to vector<8x512xf32>
    %94 = arith.mulf %93, %91 : vector<8x512xf32>
    %95 = arith.addf %67, %94 : vector<8x512xf32>
    %c3_49 = arith.constant 3 : index
    %96 = memref.load %arg3[%c3_49] : memref<10xf32, #tpu.memory_space<smem>>
    %97 = vector.broadcast %96 : f32 to vector<8x512xf32>
    %c0_50 = arith.constant 0 : index
    %c3_51 = arith.constant 3 : index
    %98 = memref.load %arg2[%c0_50, %c3_51] : memref<5x10xf32, #tpu.memory_space<smem>>
    %99 = vector.broadcast %98 : f32 to vector<8x512xf32>
    %100 = arith.mulf %99, %1 : vector<8x512xf32>
    %101 = arith.addf %97, %100 : vector<8x512xf32>
    %c1_52 = arith.constant 1 : index
    %c3_53 = arith.constant 3 : index
    %102 = memref.load %arg2[%c1_52, %c3_53] : memref<5x10xf32, #tpu.memory_space<smem>>
    %103 = vector.broadcast %102 : f32 to vector<8x512xf32>
    %104 = arith.mulf %103, %3 : vector<8x512xf32>
    %105 = arith.addf %101, %104 : vector<8x512xf32>
    %c2_54 = arith.constant 2 : index
    %c3_55 = arith.constant 3 : index
    %106 = memref.load %arg2[%c2_54, %c3_55] : memref<5x10xf32, #tpu.memory_space<smem>>
    %107 = vector.broadcast %106 : f32 to vector<8x512xf32>
    %108 = arith.mulf %107, %5 : vector<8x512xf32>
    %109 = arith.addf %105, %108 : vector<8x512xf32>
    %c3_56 = arith.constant 3 : index
    %c3_57 = arith.constant 3 : index
    %110 = memref.load %arg2[%c3_56, %c3_57] : memref<5x10xf32, #tpu.memory_space<smem>>
    %111 = vector.broadcast %110 : f32 to vector<8x512xf32>
    %112 = arith.mulf %111, %7 : vector<8x512xf32>
    %113 = arith.addf %109, %112 : vector<8x512xf32>
    %c4_58 = arith.constant 4 : index
    %c3_59 = arith.constant 3 : index
    %114 = memref.load %arg2[%c4_58, %c3_59] : memref<5x10xf32, #tpu.memory_space<smem>>
    %115 = vector.broadcast %114 : f32 to vector<8x512xf32>
    %116 = arith.mulf %115, %9 : vector<8x512xf32>
    %117 = arith.addf %113, %116 : vector<8x512xf32>
    %cst_60 = arith.constant 0.000000e+00 : f32
    %118 = vector.broadcast %cst_60 : f32 to vector<8x512xf32>
    %119 = arith.maximumf %117, %118 : vector<8x512xf32>
    %c3_61 = arith.constant 3 : index
    %120 = memref.load %arg4[%c3_61] : memref<10xf32, #tpu.memory_space<smem>>
    %121 = vector.broadcast %120 : f32 to vector<8x512xf32>
    %122 = arith.mulf %121, %119 : vector<8x512xf32>
    %123 = arith.addf %95, %122 : vector<8x512xf32>
    %c4_62 = arith.constant 4 : index
    %124 = memref.load %arg3[%c4_62] : memref<10xf32, #tpu.memory_space<smem>>
    %125 = vector.broadcast %124 : f32 to vector<8x512xf32>
    %c0_63 = arith.constant 0 : index
    %c4_64 = arith.constant 4 : index
    %126 = memref.load %arg2[%c0_63, %c4_64] : memref<5x10xf32, #tpu.memory_space<smem>>
    %127 = vector.broadcast %126 : f32 to vector<8x512xf32>
    %128 = arith.mulf %127, %1 : vector<8x512xf32>
    %129 = arith.addf %125, %128 : vector<8x512xf32>
    %c1_65 = arith.constant 1 : index
    %c4_66 = arith.constant 4 : index
    %130 = memref.load %arg2[%c1_65, %c4_66] : memref<5x10xf32, #tpu.memory_space<smem>>
    %131 = vector.broadcast %130 : f32 to vector<8x512xf32>
    %132 = arith.mulf %131, %3 : vector<8x512xf32>
    %133 = arith.addf %129, %132 : vector<8x512xf32>
    %c2_67 = arith.constant 2 : index
    %c4_68 = arith.constant 4 : index
    %134 = memref.load %arg2[%c2_67, %c4_68] : memref<5x10xf32, #tpu.memory_space<smem>>
    %135 = vector.broadcast %134 : f32 to vector<8x512xf32>
    %136 = arith.mulf %135, %5 : vector<8x512xf32>
    %137 = arith.addf %133, %136 : vector<8x512xf32>
    %c3_69 = arith.constant 3 : index
    %c4_70 = arith.constant 4 : index
    %138 = memref.load %arg2[%c3_69, %c4_70] : memref<5x10xf32, #tpu.memory_space<smem>>
    %139 = vector.broadcast %138 : f32 to vector<8x512xf32>
    %140 = arith.mulf %139, %7 : vector<8x512xf32>
    %141 = arith.addf %137, %140 : vector<8x512xf32>
    %c4_71 = arith.constant 4 : index
    %c4_72 = arith.constant 4 : index
    %142 = memref.load %arg2[%c4_71, %c4_72] : memref<5x10xf32, #tpu.memory_space<smem>>
    %143 = vector.broadcast %142 : f32 to vector<8x512xf32>
    %144 = arith.mulf %143, %9 : vector<8x512xf32>
    %145 = arith.addf %141, %144 : vector<8x512xf32>
    %cst_73 = arith.constant 0.000000e+00 : f32
    %146 = vector.broadcast %cst_73 : f32 to vector<8x512xf32>
    %147 = arith.maximumf %145, %146 : vector<8x512xf32>
    %c4_74 = arith.constant 4 : index
    %148 = memref.load %arg4[%c4_74] : memref<10xf32, #tpu.memory_space<smem>>
    %149 = vector.broadcast %148 : f32 to vector<8x512xf32>
    %150 = arith.mulf %149, %147 : vector<8x512xf32>
    %151 = arith.addf %123, %150 : vector<8x512xf32>
    %c5 = arith.constant 5 : index
    %152 = memref.load %arg3[%c5] : memref<10xf32, #tpu.memory_space<smem>>
    %153 = vector.broadcast %152 : f32 to vector<8x512xf32>
    %c0_75 = arith.constant 0 : index
    %c5_76 = arith.constant 5 : index
    %154 = memref.load %arg2[%c0_75, %c5_76] : memref<5x10xf32, #tpu.memory_space<smem>>
    %155 = vector.broadcast %154 : f32 to vector<8x512xf32>
    %156 = arith.mulf %155, %1 : vector<8x512xf32>
    %157 = arith.addf %153, %156 : vector<8x512xf32>
    %c1_77 = arith.constant 1 : index
    %c5_78 = arith.constant 5 : index
    %158 = memref.load %arg2[%c1_77, %c5_78] : memref<5x10xf32, #tpu.memory_space<smem>>
    %159 = vector.broadcast %158 : f32 to vector<8x512xf32>
    %160 = arith.mulf %159, %3 : vector<8x512xf32>
    %161 = arith.addf %157, %160 : vector<8x512xf32>
    %c2_79 = arith.constant 2 : index
    %c5_80 = arith.constant 5 : index
    %162 = memref.load %arg2[%c2_79, %c5_80] : memref<5x10xf32, #tpu.memory_space<smem>>
    %163 = vector.broadcast %162 : f32 to vector<8x512xf32>
    %164 = arith.mulf %163, %5 : vector<8x512xf32>
    %165 = arith.addf %161, %164 : vector<8x512xf32>
    %c3_81 = arith.constant 3 : index
    %c5_82 = arith.constant 5 : index
    %166 = memref.load %arg2[%c3_81, %c5_82] : memref<5x10xf32, #tpu.memory_space<smem>>
    %167 = vector.broadcast %166 : f32 to vector<8x512xf32>
    %168 = arith.mulf %167, %7 : vector<8x512xf32>
    %169 = arith.addf %165, %168 : vector<8x512xf32>
    %c4_83 = arith.constant 4 : index
    %c5_84 = arith.constant 5 : index
    %170 = memref.load %arg2[%c4_83, %c5_84] : memref<5x10xf32, #tpu.memory_space<smem>>
    %171 = vector.broadcast %170 : f32 to vector<8x512xf32>
    %172 = arith.mulf %171, %9 : vector<8x512xf32>
    %173 = arith.addf %169, %172 : vector<8x512xf32>
    %cst_85 = arith.constant 0.000000e+00 : f32
    %174 = vector.broadcast %cst_85 : f32 to vector<8x512xf32>
    %175 = arith.maximumf %173, %174 : vector<8x512xf32>
    %c5_86 = arith.constant 5 : index
    %176 = memref.load %arg4[%c5_86] : memref<10xf32, #tpu.memory_space<smem>>
    %177 = vector.broadcast %176 : f32 to vector<8x512xf32>
    %178 = arith.mulf %177, %175 : vector<8x512xf32>
    %179 = arith.addf %151, %178 : vector<8x512xf32>
    %c6 = arith.constant 6 : index
    %180 = memref.load %arg3[%c6] : memref<10xf32, #tpu.memory_space<smem>>
    %181 = vector.broadcast %180 : f32 to vector<8x512xf32>
    %c0_87 = arith.constant 0 : index
    %c6_88 = arith.constant 6 : index
    %182 = memref.load %arg2[%c0_87, %c6_88] : memref<5x10xf32, #tpu.memory_space<smem>>
    %183 = vector.broadcast %182 : f32 to vector<8x512xf32>
    %184 = arith.mulf %183, %1 : vector<8x512xf32>
    %185 = arith.addf %181, %184 : vector<8x512xf32>
    %c1_89 = arith.constant 1 : index
    %c6_90 = arith.constant 6 : index
    %186 = memref.load %arg2[%c1_89, %c6_90] : memref<5x10xf32, #tpu.memory_space<smem>>
    %187 = vector.broadcast %186 : f32 to vector<8x512xf32>
    %188 = arith.mulf %187, %3 : vector<8x512xf32>
    %189 = arith.addf %185, %188 : vector<8x512xf32>
    %c2_91 = arith.constant 2 : index
    %c6_92 = arith.constant 6 : index
    %190 = memref.load %arg2[%c2_91, %c6_92] : memref<5x10xf32, #tpu.memory_space<smem>>
    %191 = vector.broadcast %190 : f32 to vector<8x512xf32>
    %192 = arith.mulf %191, %5 : vector<8x512xf32>
    %193 = arith.addf %189, %192 : vector<8x512xf32>
    %c3_93 = arith.constant 3 : index
    %c6_94 = arith.constant 6 : index
    %194 = memref.load %arg2[%c3_93, %c6_94] : memref<5x10xf32, #tpu.memory_space<smem>>
    %195 = vector.broadcast %194 : f32 to vector<8x512xf32>
    %196 = arith.mulf %195, %7 : vector<8x512xf32>
    %197 = arith.addf %193, %196 : vector<8x512xf32>
    %c4_95 = arith.constant 4 : index
    %c6_96 = arith.constant 6 : index
    %198 = memref.load %arg2[%c4_95, %c6_96] : memref<5x10xf32, #tpu.memory_space<smem>>
    %199 = vector.broadcast %198 : f32 to vector<8x512xf32>
    %200 = arith.mulf %199, %9 : vector<8x512xf32>
    %201 = arith.addf %197, %200 : vector<8x512xf32>
    %cst_97 = arith.constant 0.000000e+00 : f32
    %202 = vector.broadcast %cst_97 : f32 to vector<8x512xf32>
    %203 = arith.maximumf %201, %202 : vector<8x512xf32>
    %c6_98 = arith.constant 6 : index
    %204 = memref.load %arg4[%c6_98] : memref<10xf32, #tpu.memory_space<smem>>
    %205 = vector.broadcast %204 : f32 to vector<8x512xf32>
    %206 = arith.mulf %205, %203 : vector<8x512xf32>
    %207 = arith.addf %179, %206 : vector<8x512xf32>
    %c7 = arith.constant 7 : index
    %208 = memref.load %arg3[%c7] : memref<10xf32, #tpu.memory_space<smem>>
    %209 = vector.broadcast %208 : f32 to vector<8x512xf32>
    %c0_99 = arith.constant 0 : index
    %c7_100 = arith.constant 7 : index
    %210 = memref.load %arg2[%c0_99, %c7_100] : memref<5x10xf32, #tpu.memory_space<smem>>
    %211 = vector.broadcast %210 : f32 to vector<8x512xf32>
    %212 = arith.mulf %211, %1 : vector<8x512xf32>
    %213 = arith.addf %209, %212 : vector<8x512xf32>
    %c1_101 = arith.constant 1 : index
    %c7_102 = arith.constant 7 : index
    %214 = memref.load %arg2[%c1_101, %c7_102] : memref<5x10xf32, #tpu.memory_space<smem>>
    %215 = vector.broadcast %214 : f32 to vector<8x512xf32>
    %216 = arith.mulf %215, %3 : vector<8x512xf32>
    %217 = arith.addf %213, %216 : vector<8x512xf32>
    %c2_103 = arith.constant 2 : index
    %c7_104 = arith.constant 7 : index
    %218 = memref.load %arg2[%c2_103, %c7_104] : memref<5x10xf32, #tpu.memory_space<smem>>
    %219 = vector.broadcast %218 : f32 to vector<8x512xf32>
    %220 = arith.mulf %219, %5 : vector<8x512xf32>
    %221 = arith.addf %217, %220 : vector<8x512xf32>
    %c3_105 = arith.constant 3 : index
    %c7_106 = arith.constant 7 : index
    %222 = memref.load %arg2[%c3_105, %c7_106] : memref<5x10xf32, #tpu.memory_space<smem>>
    %223 = vector.broadcast %222 : f32 to vector<8x512xf32>
    %224 = arith.mulf %223, %7 : vector<8x512xf32>
    %225 = arith.addf %221, %224 : vector<8x512xf32>
    %c4_107 = arith.constant 4 : index
    %c7_108 = arith.constant 7 : index
    %226 = memref.load %arg2[%c4_107, %c7_108] : memref<5x10xf32, #tpu.memory_space<smem>>
    %227 = vector.broadcast %226 : f32 to vector<8x512xf32>
    %228 = arith.mulf %227, %9 : vector<8x512xf32>
    %229 = arith.addf %225, %228 : vector<8x512xf32>
    %cst_109 = arith.constant 0.000000e+00 : f32
    %230 = vector.broadcast %cst_109 : f32 to vector<8x512xf32>
    %231 = arith.maximumf %229, %230 : vector<8x512xf32>
    %c7_110 = arith.constant 7 : index
    %232 = memref.load %arg4[%c7_110] : memref<10xf32, #tpu.memory_space<smem>>
    %233 = vector.broadcast %232 : f32 to vector<8x512xf32>
    %234 = arith.mulf %233, %231 : vector<8x512xf32>
    %235 = arith.addf %207, %234 : vector<8x512xf32>
    %c8 = arith.constant 8 : index
    %236 = memref.load %arg3[%c8] : memref<10xf32, #tpu.memory_space<smem>>
    %237 = vector.broadcast %236 : f32 to vector<8x512xf32>
    %c0_111 = arith.constant 0 : index
    %c8_112 = arith.constant 8 : index
    %238 = memref.load %arg2[%c0_111, %c8_112] : memref<5x10xf32, #tpu.memory_space<smem>>
    %239 = vector.broadcast %238 : f32 to vector<8x512xf32>
    %240 = arith.mulf %239, %1 : vector<8x512xf32>
    %241 = arith.addf %237, %240 : vector<8x512xf32>
    %c1_113 = arith.constant 1 : index
    %c8_114 = arith.constant 8 : index
    %242 = memref.load %arg2[%c1_113, %c8_114] : memref<5x10xf32, #tpu.memory_space<smem>>
    %243 = vector.broadcast %242 : f32 to vector<8x512xf32>
    %244 = arith.mulf %243, %3 : vector<8x512xf32>
    %245 = arith.addf %241, %244 : vector<8x512xf32>
    %c2_115 = arith.constant 2 : index
    %c8_116 = arith.constant 8 : index
    %246 = memref.load %arg2[%c2_115, %c8_116] : memref<5x10xf32, #tpu.memory_space<smem>>
    %247 = vector.broadcast %246 : f32 to vector<8x512xf32>
    %248 = arith.mulf %247, %5 : vector<8x512xf32>
    %249 = arith.addf %245, %248 : vector<8x512xf32>
    %c3_117 = arith.constant 3 : index
    %c8_118 = arith.constant 8 : index
    %250 = memref.load %arg2[%c3_117, %c8_118] : memref<5x10xf32, #tpu.memory_space<smem>>
    %251 = vector.broadcast %250 : f32 to vector<8x512xf32>
    %252 = arith.mulf %251, %7 : vector<8x512xf32>
    %253 = arith.addf %249, %252 : vector<8x512xf32>
    %c4_119 = arith.constant 4 : index
    %c8_120 = arith.constant 8 : index
    %254 = memref.load %arg2[%c4_119, %c8_120] : memref<5x10xf32, #tpu.memory_space<smem>>
    %255 = vector.broadcast %254 : f32 to vector<8x512xf32>
    %256 = arith.mulf %255, %9 : vector<8x512xf32>
    %257 = arith.addf %253, %256 : vector<8x512xf32>
    %cst_121 = arith.constant 0.000000e+00 : f32
    %258 = vector.broadcast %cst_121 : f32 to vector<8x512xf32>
    %259 = arith.maximumf %257, %258 : vector<8x512xf32>
    %c8_122 = arith.constant 8 : index
    %260 = memref.load %arg4[%c8_122] : memref<10xf32, #tpu.memory_space<smem>>
    %261 = vector.broadcast %260 : f32 to vector<8x512xf32>
    %262 = arith.mulf %261, %259 : vector<8x512xf32>
    %263 = arith.addf %235, %262 : vector<8x512xf32>
    %c9 = arith.constant 9 : index
    %264 = memref.load %arg3[%c9] : memref<10xf32, #tpu.memory_space<smem>>
    %265 = vector.broadcast %264 : f32 to vector<8x512xf32>
    %c0_123 = arith.constant 0 : index
    %c9_124 = arith.constant 9 : index
    %266 = memref.load %arg2[%c0_123, %c9_124] : memref<5x10xf32, #tpu.memory_space<smem>>
    %267 = vector.broadcast %266 : f32 to vector<8x512xf32>
    %268 = arith.mulf %267, %1 : vector<8x512xf32>
    %269 = arith.addf %265, %268 : vector<8x512xf32>
    %c1_125 = arith.constant 1 : index
    %c9_126 = arith.constant 9 : index
    %270 = memref.load %arg2[%c1_125, %c9_126] : memref<5x10xf32, #tpu.memory_space<smem>>
    %271 = vector.broadcast %270 : f32 to vector<8x512xf32>
    %272 = arith.mulf %271, %3 : vector<8x512xf32>
    %273 = arith.addf %269, %272 : vector<8x512xf32>
    %c2_127 = arith.constant 2 : index
    %c9_128 = arith.constant 9 : index
    %274 = memref.load %arg2[%c2_127, %c9_128] : memref<5x10xf32, #tpu.memory_space<smem>>
    %275 = vector.broadcast %274 : f32 to vector<8x512xf32>
    %276 = arith.mulf %275, %5 : vector<8x512xf32>
    %277 = arith.addf %273, %276 : vector<8x512xf32>
    %c3_129 = arith.constant 3 : index
    %c9_130 = arith.constant 9 : index
    %278 = memref.load %arg2[%c3_129, %c9_130] : memref<5x10xf32, #tpu.memory_space<smem>>
    %279 = vector.broadcast %278 : f32 to vector<8x512xf32>
    %280 = arith.mulf %279, %7 : vector<8x512xf32>
    %281 = arith.addf %277, %280 : vector<8x512xf32>
    %c4_131 = arith.constant 4 : index
    %c9_132 = arith.constant 9 : index
    %282 = memref.load %arg2[%c4_131, %c9_132] : memref<5x10xf32, #tpu.memory_space<smem>>
    %283 = vector.broadcast %282 : f32 to vector<8x512xf32>
    %284 = arith.mulf %283, %9 : vector<8x512xf32>
    %285 = arith.addf %281, %284 : vector<8x512xf32>
    %cst_133 = arith.constant 0.000000e+00 : f32
    %286 = vector.broadcast %cst_133 : f32 to vector<8x512xf32>
    %287 = arith.maximumf %285, %286 : vector<8x512xf32>
    %c9_134 = arith.constant 9 : index
    %288 = memref.load %arg4[%c9_134] : memref<10xf32, #tpu.memory_space<smem>>
    %289 = vector.broadcast %288 : f32 to vector<8x512xf32>
    %290 = arith.mulf %289, %287 : vector<8x512xf32>
    %291 = arith.addf %263, %290 : vector<8x512xf32>
    %292 = math.exp %291 : vector<8x512xf32>
    %cst_135 = arith.constant 1.000000e+00 : f32
    %293 = vector.broadcast %cst_135 : f32 to vector<8x512xf32>
    %294 = arith.addf %293, %292 : vector<8x512xf32>
    %cst_136 = arith.constant 1.000000e+00 : f32
    %295 = vector.broadcast %cst_136 : f32 to vector<8x512xf32>
    %296 = arith.divf %295, %294 : vector<8x512xf32>
    %c0_137 = arith.constant 0 : index
    %c0_138 = arith.constant 0 : index
    %297 = vector.load %arg6[%c0_137, %c0_138] : memref<8x512xf32, #tpu.memory_space<vmem>>, vector<8x512xf32>
    tpu.vector_store %arg6[%c0_137, %c0_138], %296 {strides = array<i32>} : memref<8x512xf32, #tpu.memory_space<vmem>>, vector<8x512xf32>,
    return
  }
  func.func @transform_0(%arg0: i32) -> (i32, i32, i32) {
    %c0_i32 = arith.constant 0 : i32
    %c0_i32_0 = arith.constant 0 : i32
    %c0_i32_1 = arith.constant 0 : i32
    return %c0_i32, %arg0, %c0_i32_0 : i32, i32, i32
  }
  func.func @transform_1(%arg0: i32) -> (i32, i32) {
    %c0_i32 = arith.constant 0 : i32
    %c0_i32_0 = arith.constant 0 : i32
    %c0_i32_1 = arith.constant 0 : i32
    return %c0_i32, %c0_i32_0 : i32, i32
  }
  func.func @transform_2(%arg0: i32) -> i32 {
    %c0_i32 = arith.constant 0 : i32
    %c0_i32_0 = arith.constant 0 : i32
    return %c0_i32 : i32
  }
  func.func @transform_3(%arg0: i32) -> i32 {
    %c0_i32 = arith.constant 0 : i32
    %c0_i32_0 = arith.constant 0 : i32
    return %c0_i32 : i32
  }
  func.func @transform_4(%arg0: i32) -> i32 {
    %c0_i32 = arith.constant 0 : i32
    %c0_i32_0 = arith.constant 0 : i32
    return %c0_i32 : i32
  }
  func.func @transform_5(%arg0: i32) -> (i32, i32) {
    %c0_i32 = arith.constant 0 : i32
    %c0_i32_0 = arith.constant 0 : i32
    return %arg0, %c0_i32 : i32, i32
  }
}

</mosaic_0001>

<llo_original>
// kernel: central_classifier.1
$region0: #{central_classifier.1}
  #allocation0 [shape = 'u32[]', space=smem, size = 0x4, offset = 0x4, fixed_abs, tag = 'smem constant byte address 0x4 - core index']
  #allocation1 [shape = 'u32[144,128]{1,0:T(1,128)}', space=vmem, size = 0x12000, scoped, tag = 'internal scratch']
  #allocation2 [shape = 'f32[1]{0:T(128)S(6)}', space=smem, size = 0x200, scoped, tag = 'scoped memory for central_classifier.1']
  %s0 = inlined_call_operand.vmem [shape: f32[5,8,512], index: 0, kind: input, shape index: {}]
  %s1 = inlined_call_operand.vmem [shape: f32[5,10], index: 1, kind: input, shape index: {}]
  %s2 = inlined_call_operand.vmem [shape: f32[10], index: 2, kind: input, shape index: {}]
  %s3 = inlined_call_operand.vmem [shape: f32[10], index: 3, kind: input, shape index: {}]
  %s4 = inlined_call_operand.<no memory space> [shape: f32[1], index: 4, kind: input, shape index: {}]
  %s5 = inlined_call_operand.vmem [shape: f32[8,512], index: 5, kind: output, shape index: {}]
  %s6 = sld [smem:[#allocation0]]
  $region42: #{central_classifier.1} parent=0
    _
  %s8 = ssub.s32 1, %s6
  %s9 = scalar_select 0, %s8, %s6
  %10 = sst [smem:[#allocation2]] %s4
  $region1: #{central_classifier.1} parent=0
    #allocation3 [shape = 'u8[4096]{0}', space=smem, size = 0x1000, scoped, tag = 'input window, operand 1, single buffered']
    #allocation4 [shape = 's32[1]{0}', space=sflag, size = 0x4, scoped, tag = 'scoped memory for central_classifier.1']
    #allocation5 [shape = 'u8[512]{0}', space=smem, size = 0x200, scoped, tag = 'input window, operand 2, single buffered']
    #allocation6 [shape = 's32[1]{0}', space=sflag, size = 0x4, scoped, tag = 'scoped memory for central_classifier.1']
    #allocation7 [shape = 'u8[512]{0}', space=smem, size = 0x200, scoped, tag = 'input window, operand 3, single buffered']
    %11 = vsyncpa [#allocation4], 0
    %12 = vsyncpa [#allocation6], 0
    // Predicated region
    $region2: #{central_classifier.1} parent=1 // pred_check
      _
    $region3: #{central_classifier.1} parent=1 // pred_check_branch
      %14 = sbr.rel (0) target = $region5
    $region4: #{central_classifier.1} parent=1 // pred_region
      _
    $region5: #{central_classifier.1} parent=1 // pred_fallthru
      _
    // Predicated region
    $region6: #{central_classifier.1} parent=1 // pred_check
      _
    $region7: #{central_classifier.1} parent=1 // pred_check_branch
      %16 = sbr.rel (0) target = $region9
    $region8: #{central_classifier.1} parent=1 // pred_region
      %s18 = ssub.s32 128, 128
      %19 = vsyncadd [#allocation4], %s18
      %s21 = sshll.u32 %s1, 4
      %s22 = int_to_ptr.vmem [resolvable:$true] %s21
      %24 = dma.vmem_to_smem %s22, 128, [#allocation3], [#allocation4]
    $region9: #{central_classifier.1} parent=1 // pred_fallthru
      _
    // Predicated region
    $region10: #{central_classifier.1} parent=1 // pred_check
      _
    $region11: #{central_classifier.1} parent=1 // pred_check_branch
      %26 = sbr.rel (0) target = $region13
    $region12: #{central_classifier.1} parent=1 // pred_region
      %s28 = ssub.s32 16, 16
      %29 = vsyncadd [#allocation6], %s28
      %s31 = sshll.u32 %s2, 4
      %s32 = int_to_ptr.vmem [resolvable:$true] %s31
      %34 = dma.vmem_to_smem %s32, 16, [#allocation5], [#allocation6]
    $region13: #{central_classifier.1} parent=1 // pred_fallthru
      _
    // Predicated region
    $region14: #{central_classifier.1} parent=1 // pred_check
      _
    $region15: #{central_classifier.1} parent=1 // pred_check_branch
      %36 = sbr.rel (0) target = $region17
    $region16: #{central_classifier.1} parent=1 // pred_region
      %s38 = ssub.s32 16, 16
      %39 = vsyncadd [#allocation6], %s38
      %s41 = sshll.u32 %s3, 4
      %s42 = int_to_ptr.vmem [resolvable:$true] %s41
      %44 = dma.vmem_to_smem %s42, 16, [#allocation7], [#allocation6]
    $region17: #{central_classifier.1} parent=1 // pred_fallthru
      _
    // Predicated region
    $region18: #{central_classifier.1} parent=1 // pred_check
      _
    $region19: #{central_classifier.1} parent=1 // pred_check_branch
      %46 = sbr.rel (0) target = $region21
    $region20: #{central_classifier.1} parent=1 // pred_region
      _
    $region21: #{central_classifier.1} parent=1 // pred_fallthru
      _
    // Predicated region
    $region22: #{central_classifier.1} parent=1 // pred_check
      _
    $region23: #{central_classifier.1} parent=1 // pred_check_branch
      %48 = sbr.rel (0) target = $region25
    $region24: #{central_classifier.1} parent=1 // pred_region
      %49 = dma.done [#allocation4], 128
    $region25: #{central_classifier.1} parent=1 // pred_fallthru
      _
    // Predicated region
    $region26: #{central_classifier.1} parent=1 // pred_check
      _
    $region27: #{central_classifier.1} parent=1 // pred_check_branch
      %51 = sbr.rel (0) target = $region29
    $region28: #{central_classifier.1} parent=1 // pred_region
      %52 = dma.done [#allocation6], 16
    $region29: #{central_classifier.1} parent=1 // pred_fallthru
      _
    // Predicated region
    $region30: #{central_classifier.1} parent=1 // pred_check
      _
    $region31: #{central_classifier.1} parent=1 // pred_check_branch
      %54 = sbr.rel (0) target = $region33
    $region32: #{central_classifier.1} parent=1 // pred_region
      %55 = dma.done [#allocation6], 16
    $region33: #{central_classifier.1} parent=1 // pred_fallthru
      _
    %56 = sfence
    %v57 = vld [vmem:[%s0] sm:$0xff]
    %v58 = vld [vmem:[%s0 + $0x8] sm:$0xff]
    %v59 = vld [vmem:[%s0 + $0x10] sm:$0xff]
    %v60 = vld [vmem:[%s0 + $0x18] sm:$0xff]
    %s61 = scalar_lea.vmem %s0, 32
    %v62 = vld [vmem:[%s61] sm:$0xff]
    %v63 = vld [vmem:[%s61 + $0x8] sm:$0xff]
    %v64 = vld [vmem:[%s61 + $0x10] sm:$0xff]
    %v65 = vld [vmem:[%s61 + $0x18] sm:$0xff]
    %s66 = scalar_lea.vmem %s0, 64
    %v67 = vld [vmem:[%s66] sm:$0xff]
    %v68 = vld [vmem:[%s66 + $0x8] sm:$0xff]
    %v69 = vld [vmem:[%s66 + $0x10] sm:$0xff]
    %v70 = vld [vmem:[%s66 + $0x18] sm:$0xff]
    %s71 = scalar_lea.vmem %s0, 96
    %v72 = vld [vmem:[%s71] sm:$0xff]
    %v73 = vld [vmem:[%s71 + $0x8] sm:$0xff]
    %v74 = vld [vmem:[%s71 + $0x10] sm:$0xff]
    %v75 = vld [vmem:[%s71 + $0x18] sm:$0xff]
    %s76 = scalar_lea.vmem %s0, 128
    %v77 = vld [vmem:[%s76] sm:$0xff]
    %v78 = vld [vmem:[%s76 + $0x8] sm:$0xff]
    %v79 = vld [vmem:[%s76 + $0x10] sm:$0xff]
    %v80 = vld [vmem:[%s76 + $0x18] sm:$0xff]
    %s81 = sld [smem:[#allocation2]]
    %v82 = vstv %s81
    %s83 = sld [smem:[#allocation5]]
    %v84 = vstv %s83
    %s85 = sld [smem:[#allocation3]]
    %v86 = vstv %s85
    %v87 = vmul.f32 %v86, %v57
    %v88 = vmul.f32 %v86, %v58
    %v89 = vmul.f32 %v86, %v59
    %v90 = vmul.f32 %v86, %v60
    %v91 = vadd.f32 %v84, %v87
    %v92 = vadd.f32 %v84, %v88
    %v93 = vadd.f32 %v84, %v89
    %v94 = vadd.f32 %v84, %v90
    %s95 = sld [smem:[#allocation3 + $0x80]]
    %v96 = vstv %s95
    %v97 = vmul.f32 %v96, %v62
    %v98 = vmul.f32 %v96, %v63
    %v99 = vmul.f32 %v96, %v64
    %v100 = vmul.f32 %v96, %v65
    %v101 = vadd.f32 %v91, %v97
    %v102 = vadd.f32 %v92, %v98
    %v103 = vadd.f32 %v93, %v99
    %v104 = vadd.f32 %v94, %v100
    %s105 = sld [smem:[#allocation3 + $0x100]]
    %v106 = vstv %s105
    %v107 = vmul.f32 %v106, %v67
    %v108 = vmul.f32 %v106, %v68
    %v109 = vmul.f32 %v106, %v69
    %v110 = vmul.f32 %v106, %v70
    %v111 = vadd.f32 %v101, %v107
    %v112 = vadd.f32 %v102, %v108
    %v113 = vadd.f32 %v103, %v109
    %v114 = vadd.f32 %v104, %v110
    %s115 = sld [smem:[#allocation3 + $0x180]]
    %v116 = vstv %s115
    %v117 = vmul.f32 %v116, %v72
    %v118 = vmul.f32 %v116, %v73
    %v119 = vmul.f32 %v116, %v74
    %v120 = vmul.f32 %v116, %v75
    %v121 = vadd.f32 %v111, %v117
    %v122 = vadd.f32 %v112, %v118
    %v123 = vadd.f32 %v113, %v119
    %v124 = vadd.f32 %v114, %v120
    %s125 = sld [smem:[#allocation3 + $0x200]]
    %v126 = vstv %s125
    %v127 = vmul.f32 %v126, %v77
    %v128 = vmul.f32 %v126, %v78
    %v129 = vmul.f32 %v126, %v79
    %v130 = vmul.f32 %v126, %v80
    %v131 = vadd.f32 %v121, %v127
    %v132 = vadd.f32 %v122, %v128
    %v133 = vadd.f32 %v123, %v129
    %v134 = vadd.f32 %v124, %v130
    %v135 = vmax.f32 %v131, 0.0
    %v136 = vmax.f32 %v132, 0.0
    %v137 = vmax.f32 %v133, 0.0
    %v138 = vmax.f32 %v134, 0.0
    %s139 = sld [smem:[#allocation7]]
    %v140 = vstv %s139
    %v141 = vmul.f32 %v140, %v135
    %v142 = vmul.f32 %v140, %v136
    %v143 = vmul.f32 %v140, %v137
    %v144 = vmul.f32 %v140, %v138
    %v145 = vadd.f32 %v82, %v141
    %v146 = vadd.f32 %v82, %v142
    %v147 = vadd.f32 %v82, %v143
    %v148 = vadd.f32 %v82, %v144
    %s149 = sld [smem:[#allocation5 + $0x1]]
    %v150 = vstv %s149
    %s151 = sld [smem:[#allocation3 + $0x1]]
    %v152 = vstv %s151
    %v153 = vmul.f32 %v152, %v57
    %v154 = vmul.f32 %v152, %v58
    %v155 = vmul.f32 %v152, %v59
    %v156 = vmul.f32 %v152, %v60
    %v157 = vadd.f32 %v150, %v153
    %v158 = vadd.f32 %v150, %v154
    %v159 = vadd.f32 %v150, %v155
    %v160 = vadd.f32 %v150, %v156
    %s161 = sld [smem:[#allocation3 + $0x81]]
    %v162 = vstv %s161
    %v163 = vmul.f32 %v162, %v62
    %v164 = vmul.f32 %v162, %v63
    %v165 = vmul.f32 %v162, %v64
    %v166 = vmul.f32 %v162, %v65
    %v167 = vadd.f32 %v157, %v163
    %v168 = vadd.f32 %v158, %v164
    %v169 = vadd.f32 %v159, %v165
    %v170 = vadd.f32 %v160, %v166
    %s171 = sld [smem:[#allocation3 + $0x101]]
    %v172 = vstv %s171
    %v173 = vmul.f32 %v172, %v67
    %v174 = vmul.f32 %v172, %v68
    %v175 = vmul.f32 %v172, %v69
    %v176 = vmul.f32 %v172, %v70
    %v177 = vadd.f32 %v167, %v173
    %v178 = vadd.f32 %v168, %v174
    %v179 = vadd.f32 %v169, %v175
    %v180 = vadd.f32 %v170, %v176
    %s181 = sld [smem:[#allocation3 + $0x181]]
    %v182 = vstv %s181
    %v183 = vmul.f32 %v182, %v72
    %v184 = vmul.f32 %v182, %v73
    %v185 = vmul.f32 %v182, %v74
    %v186 = vmul.f32 %v182, %v75
    %v187 = vadd.f32 %v177, %v183
    %v188 = vadd.f32 %v178, %v184
    %v189 = vadd.f32 %v179, %v185
    %v190 = vadd.f32 %v180, %v186
    %s191 = sld [smem:[#allocation3 + $0x201]]
    %v192 = vstv %s191
    %v193 = vmul.f32 %v192, %v77
    %v194 = vmul.f32 %v192, %v78
    %v195 = vmul.f32 %v192, %v79
    %v196 = vmul.f32 %v192, %v80
    %v197 = vadd.f32 %v187, %v193
    %v198 = vadd.f32 %v188, %v194
    %v199 = vadd.f32 %v189, %v195
    %v200 = vadd.f32 %v190, %v196
    %v201 = vmax.f32 %v197, 0.0
    %v202 = vmax.f32 %v198, 0.0
    %v203 = vmax.f32 %v199, 0.0
    %v204 = vmax.f32 %v200, 0.0
    %s205 = sld [smem:[#allocation7 + $0x1]]
    %v206 = vstv %s205
    %v207 = vmul.f32 %v206, %v201
    %v208 = vmul.f32 %v206, %v202
    %v209 = vmul.f32 %v206, %v203
    %v210 = vmul.f32 %v206, %v204
    %v211 = vadd.f32 %v145, %v207
    %v212 = vadd.f32 %v146, %v208
    %v213 = vadd.f32 %v147, %v209
    %v214 = vadd.f32 %v148, %v210
    %s215 = sld [smem:[#allocation5 + $0x2]]
    %v216 = vstv %s215
    %s217 = sld [smem:[#allocation3 + $0x2]]
    %v218 = vstv %s217
    %v219 = vmul.f32 %v218, %v57
    %v220 = vmul.f32 %v218, %v58
    %v221 = vmul.f32 %v218, %v59
    %v222 = vmul.f32 %v218, %v60
    %v223 = vadd.f32 %v216, %v219
    %v224 = vadd.f32 %v216, %v220
    %v225 = vadd.f32 %v216, %v221
    %v226 = vadd.f32 %v216, %v222
    %s227 = sld [smem:[#allocation3 + $0x82]]
    %v228 = vstv %s227
    %v229 = vmul.f32 %v228, %v62
    %v230 = vmul.f32 %v228, %v63
    %v231 = vmul.f32 %v228, %v64
    %v232 = vmul.f32 %v228, %v65
    %v233 = vadd.f32 %v223, %v229
    %v234 = vadd.f32 %v224, %v230
    %v235 = vadd.f32 %v225, %v231
    %v236 = vadd.f32 %v226, %v232
    %s237 = sld [smem:[#allocation3 + $0x102]]
    %v238 = vstv %s237
    %v239 = vmul.f32 %v238, %v67
    %v240 = vmul.f32 %v238, %v68
    %v241 = vmul.f32 %v238, %v69
    %v242 = vmul.f32 %v238, %v70
    %v243 = vadd.f32 %v233, %v239
    %v244 = vadd.f32 %v234, %v240
    %v245 = vadd.f32 %v235, %v241
    %v246 = vadd.f32 %v236, %v242
    %s247 = sld [smem:[#allocation3 + $0x182]]
    %v248 = vstv %s247
    %v249 = vmul.f32 %v248, %v72
    %v250 = vmul.f32 %v248, %v73
    %v251 = vmul.f32 %v248, %v74
    %v252 = vmul.f32 %v248, %v75
    %v253 = vadd.f32 %v243, %v249
    %v254 = vadd.f32 %v244, %v250
    %v255 = vadd.f32 %v245, %v251
    %v256 = vadd.f32 %v246, %v252
    %s257 = sld [smem:[#allocation3 + $0x202]]
    %v258 = vstv %s257
    %v259 = vmul.f32 %v258, %v77
    %v260 = vmul.f32 %v258, %v78
    %v261 = vmul.f32 %v258, %v79
    %v262 = vmul.f32 %v258, %v80
    %v263 = vadd.f32 %v253, %v259
    %v264 = vadd.f32 %v254, %v260
    %v265 = vadd.f32 %v255, %v261
    %v266 = vadd.f32 %v256, %v262
    %v267 = vmax.f32 %v263, 0.0
    %v268 = vmax.f32 %v264, 0.0
    %v269 = vmax.f32 %v265, 0.0
    %v270 = vmax.f32 %v266, 0.0
    %s271 = sld [smem:[#allocation7 + $0x2]]
    %v272 = vstv %s271
    %v273 = vmul.f32 %v272, %v267
    %v274 = vmul.f32 %v272, %v268
    %v275 = vmul.f32 %v272, %v269
    %v276 = vmul.f32 %v272, %v270
    %v277 = vadd.f32 %v211, %v273
    %v278 = vadd.f32 %v212, %v274
    %v279 = vadd.f32 %v213, %v275
    %v280 = vadd.f32 %v214, %v276
    %s281 = sld [smem:[#allocation5 + $0x3]]
    %v282 = vstv %s281
    %s283 = sld [smem:[#allocation3 + $0x3]]
    %v284 = vstv %s283
    %v285 = vmul.f32 %v284, %v57
    %v286 = vmul.f32 %v284, %v58
    %v287 = vmul.f32 %v284, %v59
    %v288 = vmul.f32 %v284, %v60
    %v289 = vadd.f32 %v282, %v285
    %v290 = vadd.f32 %v282, %v286
    %v291 = vadd.f32 %v282, %v287
    %v292 = vadd.f32 %v282, %v288
    %s293 = sld [smem:[#allocation3 + $0x83]]
    %v294 = vstv %s293
    %v295 = vmul.f32 %v294, %v62
    %v296 = vmul.f32 %v294, %v63
    %v297 = vmul.f32 %v294, %v64
    %v298 = vmul.f32 %v294, %v65
    %v299 = vadd.f32 %v289, %v295
    %v300 = vadd.f32 %v290, %v296
    %v301 = vadd.f32 %v291, %v297
    %v302 = vadd.f32 %v292, %v298
    %s303 = sld [smem:[#allocation3 + $0x103]]
    %v304 = vstv %s303
    %v305 = vmul.f32 %v304, %v67
    %v306 = vmul.f32 %v304, %v68
    %v307 = vmul.f32 %v304, %v69
    %v308 = vmul.f32 %v304, %v70
    %v309 = vadd.f32 %v299, %v305
    %v310 = vadd.f32 %v300, %v306
    %v311 = vadd.f32 %v301, %v307
    %v312 = vadd.f32 %v302, %v308
    %s313 = sld [smem:[#allocation3 + $0x183]]
    %v314 = vstv %s313
    %v315 = vmul.f32 %v314, %v72
    %v316 = vmul.f32 %v314, %v73
    %v317 = vmul.f32 %v314, %v74
    %v318 = vmul.f32 %v314, %v75
    %v319 = vadd.f32 %v309, %v315
    %v320 = vadd.f32 %v310, %v316
    %v321 = vadd.f32 %v311, %v317
    %v322 = vadd.f32 %v312, %v318
    %s323 = sld [smem:[#allocation3 + $0x203]]
    %v324 = vstv %s323
    %v325 = vmul.f32 %v324, %v77
    %v326 = vmul.f32 %v324, %v78
    %v327 = vmul.f32 %v324, %v79
    %v328 = vmul.f32 %v324, %v80
    %v329 = vadd.f32 %v319, %v325
    %v330 = vadd.f32 %v320, %v326
    %v331 = vadd.f32 %v321, %v327
    %v332 = vadd.f32 %v322, %v328
    %v333 = vmax.f32 %v329, 0.0
    %v334 = vmax.f32 %v330, 0.0
    %v335 = vmax.f32 %v331, 0.0
    %v336 = vmax.f32 %v332, 0.0
    %s337 = sld [smem:[#allocation7 + $0x3]]
    %v338 = vstv %s337
    %v339 = vmul.f32 %v338, %v333
    %v340 = vmul.f32 %v338, %v334
    %v341 = vmul.f32 %v338, %v335
    %v342 = vmul.f32 %v338, %v336
    %v343 = vadd.f32 %v277, %v339
    %v344 = vadd.f32 %v278, %v340
    %v345 = vadd.f32 %v279, %v341
    %v346 = vadd.f32 %v280, %v342
    %s347 = sld [smem:[#allocation5 + $0x4]]
    %v348 = vstv %s347
    %s349 = sld [smem:[#allocation3 + $0x4]]
    %v350 = vstv %s349
    %v351 = vmul.f32 %v350, %v57
    %v352 = vmul.f32 %v350, %v58
    %v353 = vmul.f32 %v350, %v59
    %v354 = vmul.f32 %v350, %v60
    %v355 = vadd.f32 %v348, %v351
    %v356 = vadd.f32 %v348, %v352
    %v357 = vadd.f32 %v348, %v353
    %v358 = vadd.f32 %v348, %v354
    %s359 = sld [smem:[#allocation3 + $0x84]]
    %v360 = vstv %s359
    %v361 = vmul.f32 %v360, %v62
    %v362 = vmul.f32 %v360, %v63
    %v363 = vmul.f32 %v360, %v64
    %v364 = vmul.f32 %v360, %v65
    %v365 = vadd.f32 %v355, %v361
    %v366 = vadd.f32 %v356, %v362
    %v367 = vadd.f32 %v357, %v363
    %v368 = vadd.f32 %v358, %v364
    %s369 = sld [smem:[#allocation3 + $0x104]]
    %v370 = vstv %s369
    %v371 = vmul.f32 %v370, %v67
    %v372 = vmul.f32 %v370, %v68
    %v373 = vmul.f32 %v370, %v69
    %v374 = vmul.f32 %v370, %v70
    %v375 = vadd.f32 %v365, %v371
    %v376 = vadd.f32 %v366, %v372
    %v377 = vadd.f32 %v367, %v373
    %v378 = vadd.f32 %v368, %v374
    %s379 = sld [smem:[#allocation3 + $0x184]]
    %v380 = vstv %s379
    %v381 = vmul.f32 %v380, %v72
    %v382 = vmul.f32 %v380, %v73
    %v383 = vmul.f32 %v380, %v74
    %v384 = vmul.f32 %v380, %v75
    %v385 = vadd.f32 %v375, %v381
    %v386 = vadd.f32 %v376, %v382
    %v387 = vadd.f32 %v377, %v383
    %v388 = vadd.f32 %v378, %v384
    %s389 = sld [smem:[#allocation3 + $0x204]]
    %v390 = vstv %s389
    %v391 = vmul.f32 %v390, %v77
    %v392 = vmul.f32 %v390, %v78
    %v393 = vmul.f32 %v390, %v79
    %v394 = vmul.f32 %v390, %v80
    %v395 = vadd.f32 %v385, %v391
    %v396 = vadd.f32 %v386, %v392
    %v397 = vadd.f32 %v387, %v393
    %v398 = vadd.f32 %v388, %v394
    %v399 = vmax.f32 %v395, 0.0
    %v400 = vmax.f32 %v396, 0.0
    %v401 = vmax.f32 %v397, 0.0
    %v402 = vmax.f32 %v398, 0.0
    %s403 = sld [smem:[#allocation7 + $0x4]]
    %v404 = vstv %s403
    %v405 = vmul.f32 %v404, %v399
    %v406 = vmul.f32 %v404, %v400
    %v407 = vmul.f32 %v404, %v401
    %v408 = vmul.f32 %v404, %v402
    %v409 = vadd.f32 %v343, %v405
    %v410 = vadd.f32 %v344, %v406
    %v411 = vadd.f32 %v345, %v407
    %v412 = vadd.f32 %v346, %v408
    %s413 = sld [smem:[#allocation5 + $0x5]]
    %v414 = vstv %s413
    %s415 = sld [smem:[#allocation3 + $0x5]]
    %v416 = vstv %s415
    %v417 = vmul.f32 %v416, %v57
    %v418 = vmul.f32 %v416, %v58
    %v419 = vmul.f32 %v416, %v59
    %v420 = vmul.f32 %v416, %v60
    %v421 = vadd.f32 %v414, %v417
    %v422 = vadd.f32 %v414, %v418
    %v423 = vadd.f32 %v414, %v419
    %v424 = vadd.f32 %v414, %v420
    %s425 = sld [smem:[#allocation3 + $0x85]]
    %v426 = vstv %s425
    %v427 = vmul.f32 %v426, %v62
    %v428 = vmul.f32 %v426, %v63
    %v429 = vmul.f32 %v426, %v64
    %v430 = vmul.f32 %v426, %v65
    %v431 = vadd.f32 %v421, %v427
    %v432 = vadd.f32 %v422, %v428
    %v433 = vadd.f32 %v423, %v429
    %v434 = vadd.f32 %v424, %v430
    %s435 = sld [smem:[#allocation3 + $0x105]]
    %v436 = vstv %s435
    %v437 = vmul.f32 %v436, %v67
    %v438 = vmul.f32 %v436, %v68
    %v439 = vmul.f32 %v436, %v69
    %v440 = vmul.f32 %v436, %v70
    %v441 = vadd.f32 %v431, %v437
    %v442 = vadd.f32 %v432, %v438
    %v443 = vadd.f32 %v433, %v439
    %v444 = vadd.f32 %v434, %v440
    %s445 = sld [smem:[#allocation3 + $0x185]]
    %v446 = vstv %s445
    %v447 = vmul.f32 %v446, %v72
    %v448 = vmul.f32 %v446, %v73
    %v449 = vmul.f32 %v446, %v74
    %v450 = vmul.f32 %v446, %v75
    %v451 = vadd.f32 %v441, %v447
    %v452 = vadd.f32 %v442, %v448
    %v453 = vadd.f32 %v443, %v449
    %v454 = vadd.f32 %v444, %v450
    %s455 = sld [smem:[#allocation3 + $0x205]]
    %v456 = vstv %s455
    %v457 = vmul.f32 %v456, %v77
    %v458 = vmul.f32 %v456, %v78
    %v459 = vmul.f32 %v456, %v79
    %v460 = vmul.f32 %v456, %v80
    %v461 = vadd.f32 %v451, %v457
    %v462 = vadd.f32 %v452, %v458
    %v463 = vadd.f32 %v453, %v459
    %v464 = vadd.f32 %v454, %v460
    %v465 = vmax.f32 %v461, 0.0
    %v466 = vmax.f32 %v462, 0.0
    %v467 = vmax.f32 %v463, 0.0
    %v468 = vmax.f32 %v464, 0.0
    %s469 = sld [smem:[#allocation7 + $0x5]]
    %v470 = vstv %s469
    %v471 = vmul.f32 %v470, %v465
    %v472 = vmul.f32 %v470, %v466
    %v473 = vmul.f32 %v470, %v467
    %v474 = vmul.f32 %v470, %v468
    %v475 = vadd.f32 %v409, %v471
    %v476 = vadd.f32 %v410, %v472
    %v477 = vadd.f32 %v411, %v473
    %v478 = vadd.f32 %v412, %v474
    %s479 = sld [smem:[#allocation5 + $0x6]]
    %v480 = vstv %s479
    %s481 = sld [smem:[#allocation3 + $0x6]]
    %v482 = vstv %s481
    %v483 = vmul.f32 %v482, %v57
    %v484 = vmul.f32 %v482, %v58
    %v485 = vmul.f32 %v482, %v59
    %v486 = vmul.f32 %v482, %v60
    %v487 = vadd.f32 %v480, %v483
    %v488 = vadd.f32 %v480, %v484
    %v489 = vadd.f32 %v480, %v485
    %v490 = vadd.f32 %v480, %v486
    %s491 = sld [smem:[#allocation3 + $0x86]]
    %v492 = vstv %s491
    %v493 = vmul.f32 %v492, %v62
    %v494 = vmul.f32 %v492, %v63
    %v495 = vmul.f32 %v492, %v64
    %v496 = vmul.f32 %v492, %v65
    %v497 = vadd.f32 %v487, %v493
    %v498 = vadd.f32 %v488, %v494
    %v499 = vadd.f32 %v489, %v495
    %v500 = vadd.f32 %v490, %v496
    %s501 = sld [smem:[#allocation3 + $0x106]]
    %v502 = vstv %s501
    %v503 = vmul.f32 %v502, %v67
    %v504 = vmul.f32 %v502, %v68
    %v505 = vmul.f32 %v502, %v69
    %v506 = vmul.f32 %v502, %v70
    %v507 = vadd.f32 %v497, %v503
    %v508 = vadd.f32 %v498, %v504
    %v509 = vadd.f32 %v499, %v505
    %v510 = vadd.f32 %v500, %v506
    %s511 = sld [smem:[#allocation3 + $0x186]]
    %v512 = vstv %s511
    %v513 = vmul.f32 %v512, %v72
    %v514 = vmul.f32 %v512, %v73
    %v515 = vmul.f32 %v512, %v74
    %v516 = vmul.f32 %v512, %v75
    %v517 = vadd.f32 %v507, %v513
    %v518 = vadd.f32 %v508, %v514
    %v519 = vadd.f32 %v509, %v515
    %v520 = vadd.f32 %v510, %v516
    %s521 = sld [smem:[#allocation3 + $0x206]]
    %v522 = vstv %s521
    %v523 = vmul.f32 %v522, %v77
    %v524 = vmul.f32 %v522, %v78
    %v525 = vmul.f32 %v522, %v79
    %v526 = vmul.f32 %v522, %v80
    %v527 = vadd.f32 %v517, %v523
    %v528 = vadd.f32 %v518, %v524
    %v529 = vadd.f32 %v519, %v525
    %v530 = vadd.f32 %v520, %v526
    %v531 = vmax.f32 %v527, 0.0
    %v532 = vmax.f32 %v528, 0.0
    %v533 = vmax.f32 %v529, 0.0
    %v534 = vmax.f32 %v530, 0.0
    %s535 = sld [smem:[#allocation7 + $0x6]]
    %v536 = vstv %s535
    %v537 = vmul.f32 %v536, %v531
    %v538 = vmul.f32 %v536, %v532
    %v539 = vmul.f32 %v536, %v533
    %v540 = vmul.f32 %v536, %v534
    %v541 = vadd.f32 %v475, %v537
    %v542 = vadd.f32 %v476, %v538
    %v543 = vadd.f32 %v477, %v539
    %v544 = vadd.f32 %v478, %v540
    %s545 = sld [smem:[#allocation5 + $0x7]]
    %v546 = vstv %s545
    %s547 = sld [smem:[#allocation3 + $0x7]]
    %v548 = vstv %s547
    %v549 = vmul.f32 %v548, %v57
    %v550 = vmul.f32 %v548, %v58
    %v551 = vmul.f32 %v548, %v59
    %v552 = vmul.f32 %v548, %v60
    %v553 = vadd.f32 %v546, %v549
    %v554 = vadd.f32 %v546, %v550
    %v555 = vadd.f32 %v546, %v551
    %v556 = vadd.f32 %v546, %v552
    %s557 = sld [smem:[#allocation3 + $0x87]]
    %v558 = vstv %s557
    %v559 = vmul.f32 %v558, %v62
    %v560 = vmul.f32 %v558, %v63
    %v561 = vmul.f32 %v558, %v64
    %v562 = vmul.f32 %v558, %v65
    %v563 = vadd.f32 %v553, %v559
    %v564 = vadd.f32 %v554, %v560
    %v565 = vadd.f32 %v555, %v561
    %v566 = vadd.f32 %v556, %v562
    %s567 = sld [smem:[#allocation3 + $0x107]]
    %v568 = vstv %s567
    %v569 = vmul.f32 %v568, %v67
    %v570 = vmul.f32 %v568, %v68
    %v571 = vmul.f32 %v568, %v69
    %v572 = vmul.f32 %v568, %v70
    %v573 = vadd.f32 %v563, %v569
    %v574 = vadd.f32 %v564, %v570
    %v575 = vadd.f32 %v565, %v571
    %v576 = vadd.f32 %v566, %v572
    %s577 = sld [smem:[#allocation3 + $0x187]]
    %v578 = vstv %s577
    %v579 = vmul.f32 %v578, %v72
    %v580 = vmul.f32 %v578, %v73
    %v581 = vmul.f32 %v578, %v74
    %v582 = vmul.f32 %v578, %v75
    %v583 = vadd.f32 %v573, %v579
    %v584 = vadd.f32 %v574, %v580
    %v585 = vadd.f32 %v575, %v581
    %v586 = vadd.f32 %v576, %v582
    %s587 = sld [smem:[#allocation3 + $0x207]]
    %v588 = vstv %s587
    %v589 = vmul.f32 %v588, %v77
    %v590 = vmul.f32 %v588, %v78
    %v591 = vmul.f32 %v588, %v79
    %v592 = vmul.f32 %v588, %v80
    %v593 = vadd.f32 %v583, %v589
    %v594 = vadd.f32 %v584, %v590
    %v595 = vadd.f32 %v585, %v591
    %v596 = vadd.f32 %v586, %v592
    %v597 = vmax.f32 %v593, 0.0
    %v598 = vmax.f32 %v594, 0.0
    %v599 = vmax.f32 %v595, 0.0
    %v600 = vmax.f32 %v596, 0.0
    %s601 = sld [smem:[#allocation7 + $0x7]]
    %v602 = vstv %s601
    %v603 = vmul.f32 %v602, %v597
    %v604 = vmul.f32 %v602, %v598
    %v605 = vmul.f32 %v602, %v599
    %v606 = vmul.f32 %v602, %v600
    %v607 = vadd.f32 %v541, %v603
    %v608 = vadd.f32 %v542, %v604
    %v609 = vadd.f32 %v543, %v605
    %v610 = vadd.f32 %v544, %v606
    %s611 = sld [smem:[#allocation5 + $0x8]]
    %v612 = vstv %s611
    %s613 = sld [smem:[#allocation3 + $0x8]]
    %v614 = vstv %s613
    %v615 = vmul.f32 %v614, %v57
    %v616 = vmul.f32 %v614, %v58
    %v617 = vmul.f32 %v614, %v59
    %v618 = vmul.f32 %v614, %v60
    %v619 = vadd.f32 %v612, %v615
    %v620 = vadd.f32 %v612, %v616
    %v621 = vadd.f32 %v612, %v617
    %v622 = vadd.f32 %v612, %v618
    %s623 = sld [smem:[#allocation3 + $0x88]]
    %v624 = vstv %s623
    %v625 = vmul.f32 %v624, %v62
    %v626 = vmul.f32 %v624, %v63
    %v627 = vmul.f32 %v624, %v64
    %v628 = vmul.f32 %v624, %v65
    %v629 = vadd.f32 %v619, %v625
    %v630 = vadd.f32 %v620, %v626
    %v631 = vadd.f32 %v621, %v627
    %v632 = vadd.f32 %v622, %v628
    %s633 = sld [smem:[#allocation3 + $0x108]]
    %v634 = vstv %s633
    %v635 = vmul.f32 %v634, %v67
    %v636 = vmul.f32 %v634, %v68
    %v637 = vmul.f32 %v634, %v69
    %v638 = vmul.f32 %v634, %v70
    %v639 = vadd.f32 %v629, %v635
    %v640 = vadd.f32 %v630, %v636
    %v641 = vadd.f32 %v631, %v637
    %v642 = vadd.f32 %v632, %v638
    %s643 = sld [smem:[#allocation3 + $0x188]]
    %v644 = vstv %s643
    %v645 = vmul.f32 %v644, %v72
    %v646 = vmul.f32 %v644, %v73
    %v647 = vmul.f32 %v644, %v74
    %v648 = vmul.f32 %v644, %v75
    %v649 = vadd.f32 %v639, %v645
    %v650 = vadd.f32 %v640, %v646
    %v651 = vadd.f32 %v641, %v647
    %v652 = vadd.f32 %v642, %v648
    %s653 = sld [smem:[#allocation3 + $0x208]]
    %v654 = vstv %s653
    %v655 = vmul.f32 %v654, %v77
    %v656 = vmul.f32 %v654, %v78
    %v657 = vmul.f32 %v654, %v79
    %v658 = vmul.f32 %v654, %v80
    %v659 = vadd.f32 %v649, %v655
    %v660 = vadd.f32 %v650, %v656
    %v661 = vadd.f32 %v651, %v657
    %v662 = vadd.f32 %v652, %v658
    %v663 = vmax.f32 %v659, 0.0
    %v664 = vmax.f32 %v660, 0.0
    %v665 = vmax.f32 %v661, 0.0
    %v666 = vmax.f32 %v662, 0.0
    %s667 = sld [smem:[#allocation7 + $0x8]]
    %v668 = vstv %s667
    %v669 = vmul.f32 %v668, %v663
    %v670 = vmul.f32 %v668, %v664
    %v671 = vmul.f32 %v668, %v665
    %v672 = vmul.f32 %v668, %v666
    %v673 = vadd.f32 %v607, %v669
    %v674 = vadd.f32 %v608, %v670
    %v675 = vadd.f32 %v609, %v671
    %v676 = vadd.f32 %v610, %v672
    %s677 = sld [smem:[#allocation5 + $0x9]]
    %v678 = vstv %s677
    %s679 = sld [smem:[#allocation3 + $0x9]]
    %v680 = vstv %s679
    %v681 = vmul.f32 %v680, %v57
    %v682 = vmul.f32 %v680, %v58
    %v683 = vmul.f32 %v680, %v59
    %v684 = vmul.f32 %v680, %v60
    %v685 = vadd.f32 %v678, %v681
    %v686 = vadd.f32 %v678, %v682
    %v687 = vadd.f32 %v678, %v683
    %v688 = vadd.f32 %v678, %v684
    %s689 = sld [smem:[#allocation3 + $0x89]]
    %v690 = vstv %s689
    %v691 = vmul.f32 %v690, %v62
    %v692 = vmul.f32 %v690, %v63
    %v693 = vmul.f32 %v690, %v64
    %v694 = vmul.f32 %v690, %v65
    %v695 = vadd.f32 %v685, %v691
    %v696 = vadd.f32 %v686, %v692
    %v697 = vadd.f32 %v687, %v693
    %v698 = vadd.f32 %v688, %v694
    %s699 = sld [smem:[#allocation3 + $0x109]]
    %v700 = vstv %s699
    %v701 = vmul.f32 %v700, %v67
    %v702 = vmul.f32 %v700, %v68
    %v703 = vmul.f32 %v700, %v69
    %v704 = vmul.f32 %v700, %v70
    %v705 = vadd.f32 %v695, %v701
    %v706 = vadd.f32 %v696, %v702
    %v707 = vadd.f32 %v697, %v703
    %v708 = vadd.f32 %v698, %v704
    %s709 = sld [smem:[#allocation3 + $0x189]]
    %v710 = vstv %s709
    %v711 = vmul.f32 %v710, %v72
    %v712 = vmul.f32 %v710, %v73
    %v713 = vmul.f32 %v710, %v74
    %v714 = vmul.f32 %v710, %v75
    %v715 = vadd.f32 %v705, %v711
    %v716 = vadd.f32 %v706, %v712
    %v717 = vadd.f32 %v707, %v713
    %v718 = vadd.f32 %v708, %v714
    %s719 = sld [smem:[#allocation3 + $0x209]]
    %v720 = vstv %s719
    %v721 = vmul.f32 %v720, %v77
    %v722 = vmul.f32 %v720, %v78
    %v723 = vmul.f32 %v720, %v79
    %v724 = vmul.f32 %v720, %v80
    %v725 = vadd.f32 %v715, %v721
    %v726 = vadd.f32 %v716, %v722
    %v727 = vadd.f32 %v717, %v723
    %v728 = vadd.f32 %v718, %v724
    %v729 = vmax.f32 %v725, 0.0
    %v730 = vmax.f32 %v726, 0.0
    %v731 = vmax.f32 %v727, 0.0
    %v732 = vmax.f32 %v728, 0.0
    %s733 = sld [smem:[#allocation7 + $0x9]]
    %v734 = vstv %s733
    %v735 = vmul.f32 %v734, %v729
    %v736 = vmul.f32 %v734, %v730
    %v737 = vmul.f32 %v734, %v731
    %v738 = vmul.f32 %v734, %v732
    %v739 = vadd.f32 %v673, %v735
    %v740 = vadd.f32 %v674, %v736
    %v741 = vadd.f32 %v675, %v737
    %v742 = vadd.f32 %v676, %v738
    %v743 = vmul.f32 %v739, 1.442695
    %v744 = vpow.pop %v743
    %v745 = vmul.f32 %v740, 1.442695
    %v746 = vpow.pop %v745
    %v747 = vmul.f32 %v741, 1.442695
    %v748 = vpow.pop %v747
    %v749 = vmul.f32 %v742, 1.442695
    %v750 = vpow.pop %v749
    %v751 = vadd.f32 %v744, 1.0
    %v752 = vadd.f32 %v746, 1.0
    %v753 = vadd.f32 %v748, 1.0
    %v754 = vadd.f32 %v750, 1.0
    %v755 = vrcp.pop %v751
    %v756 = vmul.f32 1.0, %v755
    %v757 = vrcp.pop %v752
    %v758 = vmul.f32 1.0, %v757
    %v759 = vrcp.pop %v753
    %v760 = vmul.f32 1.0, %v759
    %v761 = vrcp.pop %v754
    %v762 = vmul.f32 1.0, %v761
    %763 = vst [vmem:[%s5] sm:$0xff] %v756
    %764 = vst [vmem:[%s5 + $0x8] sm:$0xff] %v758
    %765 = vst [vmem:[%s5 + $0x10] sm:$0xff] %v760
    %766 = vst [vmem:[%s5 + $0x18] sm:$0xff] %v762
    // Predicated region
    $region34: #{central_classifier.1} parent=1 // pred_check
      _
    $region35: #{central_classifier.1} parent=1 // pred_check_branch
      %768 = sbr.rel (0) target = $region37
    $region36: #{central_classifier.1} parent=1 // pred_region
      _
    $region37: #{central_classifier.1} parent=1 // pred_fallthru
      _
    // Predicated region
    $region38: #{central_classifier.1} parent=1 // pred_check
      _
    $region39: #{central_classifier.1} parent=1 // pred_check_branch
      %770 = sbr.rel (0) target = $region41
    $region40: #{central_classifier.1} parent=1 // pred_region
      _
    $region41: #{central_classifier.1} parent=1 // pred_fallthru
      _
    %771 = vsyncpa [#allocation4], 1
    %772 = vsyncpa [#allocation6], 1

</llo_original>
